<compile_context>
chip_gen: v5e
topology: v5e:2x2
jax: 0.10.0
libtpu: 0.0.40
codegen_flags: <defaults>
</compile_context>

<pallas_src>
import jax
import jax.numpy as jnp
from jax.experimental import pallas as pl
from jax.experimental.pallas import tpu as pltpu

P_ENC = 3        # encoding.shape[-1] == 3 (time, row, col)
_LANE = 128
_SUBLANE = 8


def _round_up(x: int, m: int) -> int:
    return ((x + m - 1) // m) * m


def _unencode_kernel(x_ref, o_ref):
    # x_ref: (row_tile, C+P), o_ref: (row_tile, C)
    # Static lane slice: drop the first P_ENC positional channels.
    o_ref[...] = x_ref[:, P_ENC:]


def _choose_row_tile(n_rows: int, cp: int, c: int, itemsize: int) -> int:
    """Largest legal row tile that fits a conservative VMEM budget."""
    # Per-row VMEM cost: lane-padded input row + lane-padded output row,
    # each double-buffered by the BlockSpec pipeline.
    bytes_per_row = (_round_up(cp, _LANE) + _round_up(c, _LANE)) * itemsize * 2
    vmem_budget = 16 * 1024 * 1024                 # safe on v5e/v6e/v7x scoped defaults
    cap = max(_SUBLANE, vmem_budget // bytes_per_row)
    cap = min(cap, 2048)                           # >=512 rows already near HBM roofline

    # For a few MiB or more of traffic keep >=2 grid steps so v7x can shard
    # the copy across both TensorCores ("parallel" grid axis).
    total_bytes = n_rows * (cp + c) * itemsize
    if total_bytes >= (4 << 20):
        cap = min(cap, max(_SUBLANE, n_rows // 2))

    if n_rows <= cap:
        return n_rows                              # single step; block == full dim (legal)

    # Largest multiple-of-8 divisor of n_rows that fits the cap -> exact grid.
    best = 0
    for d in range(_SUBLANE, cap + 1, _SUBLANE):
        if n_rows % d == 0:
            best = d
    if best:
        return best

    # No exact divisor: multiple-of-8 tile + cdiv grid (Pallas masks the tail block).
    return max(_SUBLANE, cap - cap % _SUBLANE)


def positional_unencoding(x: jax.Array, t: int = 0) -> jax.Array:
    """x: (B, Tp, Hp, Wp, C+P) -> (B, Tp, Hp, Wp, C).  `t` unused (matches torch)."""
    del t
    *lead, cp = x.shape
    c = cp - P_ENC
    n = 1
    for d in lead:
        n *= d
    x2 = x.reshape(n, cp)

    itemsize = jnp.dtype(x.dtype).itemsize
    row_tile = _choose_row_tile(n, cp, c, itemsize)
    grid = (pl.cdiv(n, row_tile),)

    # Explicit scoped-VMEM request: actual double-buffered need + 1 MiB headroom,
    # clamped to [4 MiB, 32 MiB] (within every generation's budget; v7x phys = 64 MiB).
    tile_bytes = (_round_up(cp, _LANE) + _round_up(c, _LANE)) * itemsize * row_tile
    vmem_limit = int(min(32 << 20, max(4 << 20, 2 * tile_bytes + (1 << 20))))

    out2 = pl.pallas_call(
        _unencode_kernel,
        out_shape=jax.ShapeDtypeStruct((n, c), x.dtype),
        grid_spec=pltpu.PrefetchScalarGridSpec(
            num_scalar_prefetch=0,
            grid=grid,
            in_specs=[pl.BlockSpec((row_tile, cp), lambda i: (i, 0))],
            out_specs=pl.BlockSpec((row_tile, c), lambda i: (i, 0)),
        ),
        compiler_params=pltpu.CompilerParams(
            dimension_semantics=("parallel",),
            vmem_limit_bytes=vmem_limit,
        ),
    )(x2)

    return out2.reshape(*lead, c)


if __name__ == "__main__":
    # Module params (define the positional encoding shape -> P = 3).
    T, H, W = 4, 8, 8
    B, C = 2, 32

    key = jax.random.PRNGKey(0)
    x = jax.random.normal(key, (B, T, H, W, C + P_ENC), dtype=jnp.float32)

    out = jax.block_until_ready(positional_unencoding(x, t=0))

    # Reference check against plain-JAX slice (same semantics as torch x[..., 3:]).
    ref = x[..., P_ENC:]
    assert out.shape == (B, T, H, W, C), out.shape
    assert out.dtype == x.dtype
    assert jnp.array_equal(out, ref), "mismatch vs reference slice"

    print("KERNEL_OK")
</pallas_src>

<mosaic_0001>
module attributes {stable_mosaic.version = 11 : i64} {
  func.func @_unencode_kernel(%arg0: i32, %arg1: memref<512x35xf32, #tpu.memory_space<vmem>>, %arg2: memref<512x32xf32, #tpu.memory_space<vmem>>) attributes {dimension_semantics = [#tpu.dimension_semantics<parallel>], iteration_bounds = array<i64: 1>, scalar_prefetch = 0 : i64, scratch_operands = 0 : i64, tpu.core_type = #tpu.core_type<tc>, window_params = [{transform_indices = @transform_0, window_bounds = array<i64: 512, 35>}, {transform_indices = @transform_1, window_bounds = array<i64: 512, 32>}]} {
    %c0 = arith.constant 0 : index
    %c3 = arith.constant 3 : index
    %0 = vector.load %arg1[%c0, %c3] : memref<512x35xf32, #tpu.memory_space<vmem>>, vector<512x32xf32>
    %c0_0 = arith.constant 0 : index
    %c0_1 = arith.constant 0 : index
    %1 = vector.load %arg2[%c0_0, %c0_1] : memref<512x32xf32, #tpu.memory_space<vmem>>, vector<512x32xf32>
    tpu.vector_store %arg2[%c0_0, %c0_1], %0 {strides = array<i32>} : memref<512x32xf32, #tpu.memory_space<vmem>>, vector<512x32xf32>,
    return
  }
  func.func @transform_0(%arg0: i32) -> (i32, i32) {
    %c0_i32 = arith.constant 0 : i32
    %c0_i32_0 = arith.constant 0 : i32
    return %arg0, %c0_i32 : i32, i32
  }
  func.func @transform_1(%arg0: i32) -> (i32, i32) {
    %c0_i32 = arith.constant 0 : i32
    %c0_i32_0 = arith.constant 0 : i32
    return %arg0, %c0_i32 : i32, i32
  }
}

</mosaic_0001>

<llo_original>
// kernel: tpu_custom_call.1
$region0: #{tpu_custom_call.1}
  #allocation0 [shape = 'u32[]', space=smem, size = 0x4, offset = 0x4, fixed_abs, tag = 'smem constant byte address 0x4 - core index']
  #allocation1 [shape = 'u32[72,128]{1,0:T(1,128)}', space=vmem, size = 0x9000, scoped, tag = 'internal scratch']
  %s0 = inlined_call_operand.vmem [shape: f32[512,35], index: 0, kind: input, shape index: {}]
  %s1 = inlined_call_operand.vmem [shape: f32[512,32], index: 1, kind: output, shape index: {}]
  %s2 = sld [smem:[#allocation0]]
  $region14: #{tpu_custom_call.1} parent=0
    _
  %s4 = ssub.s32 1, %s2
  %s5 = scalar_select 0, %s4, %s2
  // Predicated region
  $region2: #{tpu_custom_call.1} parent=0 // pred_check
    _
  $region3: #{tpu_custom_call.1} parent=0 // pred_check_branch
    %7 = sbr.rel (0) target = $region5
  $region4: #{tpu_custom_call.1} parent=0 // pred_region
    _
  $region5: #{tpu_custom_call.1} parent=0 // pred_fallthru
    _
  %v8 = vld [vmem:[%s0] sm:$0xff]
  %v9 = vld [vmem:[%s0 + $0x8] sm:$0xff]
  %v10 = vld [vmem:[%s0 + $0x10] sm:$0xff]
  %v11 = vld [vmem:[%s0 + $0x18] sm:$0xff]
  %v12 = vld [vmem:[%s0 + $0x20] sm:$0xff]
  %v13 = vld [vmem:[%s0 + $0x28] sm:$0xff]
  %v14 = vld [vmem:[%s0 + $0x30] sm:$0xff]
  %v15 = vld [vmem:[%s0 + $0x38] sm:$0xff]
  %v16 = vld [vmem:[%s0 + $0x40] sm:$0xff]
  %v17 = vld [vmem:[%s0 + $0x48] sm:$0xff]
  %v18 = vld [vmem:[%s0 + $0x50] sm:$0xff]
  %v19 = vld [vmem:[%s0 + $0x58] sm:$0xff]
  %v20 = vld [vmem:[%s0 + $0x60] sm:$0xff]
  %v21 = vld [vmem:[%s0 + $0x68] sm:$0xff]
  %v22 = vld [vmem:[%s0 + $0x70] sm:$0xff]
  %v23 = vld [vmem:[%s0 + $0x78] sm:$0xff]
  %v24 = vld [vmem:[%s0 + $0x80] sm:$0xff]
  %v25 = vld [vmem:[%s0 + $0x88] sm:$0xff]
  %v26 = vld [vmem:[%s0 + $0x90] sm:$0xff]
  %v27 = vld [vmem:[%s0 + $0x98] sm:$0xff]
  %v28 = vld [vmem:[%s0 + $0xa0] sm:$0xff]
  %v29 = vld [vmem:[%s0 + $0xa8] sm:$0xff]
  %v30 = vld [vmem:[%s0 + $0xb0] sm:$0xff]
  %v31 = vld [vmem:[%s0 + $0xb8] sm:$0xff]
  %v32 = vld [vmem:[%s0 + $0xc0] sm:$0xff]
  %v33 = vld [vmem:[%s0 + $0xc8] sm:$0xff]
  %v34 = vld [vmem:[%s0 + $0xd0] sm:$0xff]
  %v35 = vld [vmem:[%s0 + $0xd8] sm:$0xff]
  %v36 = vld [vmem:[%s0 + $0xe0] sm:$0xff]
  %v37 = vld [vmem:[%s0 + $0xe8] sm:$0xff]
  %v38 = vld [vmem:[%s0 + $0xf0] sm:$0xff]
  %v39 = vld [vmem:[%s0 + $0xf8] sm:$0xff]
  %v40 = vld [vmem:[%s0 + $0x100] sm:$0xff]
  %v41 = vld [vmem:[%s0 + $0x108] sm:$0xff]
  %v42 = vld [vmem:[%s0 + $0x110] sm:$0xff]
  %v43 = vld [vmem:[%s0 + $0x118] sm:$0xff]
  %v44 = vld [vmem:[%s0 + $0x120] sm:$0xff]
  %v45 = vld [vmem:[%s0 + $0x128] sm:$0xff]
  %v46 = vld [vmem:[%s0 + $0x130] sm:$0xff]
  %v47 = vld [vmem:[%s0 + $0x138] sm:$0xff]
  %v48 = vld [vmem:[%s0 + $0x140] sm:$0xff]
  %v49 = vld [vmem:[%s0 + $0x148] sm:$0xff]
  %v50 = vld [vmem:[%s0 + $0x150] sm:$0xff]
  %v51 = vld [vmem:[%s0 + $0x158] sm:$0xff]
  %v52 = vld [vmem:[%s0 + $0x160] sm:$0xff]
  %v53 = vld [vmem:[%s0 + $0x168] sm:$0xff]
  %v54 = vld [vmem:[%s0 + $0x170] sm:$0xff]
  %v55 = vld [vmem:[%s0 + $0x178] sm:$0xff]
  %v56 = vld [vmem:[%s0 + $0x180] sm:$0xff]
  %v57 = vld [vmem:[%s0 + $0x188] sm:$0xff]
  %v58 = vld [vmem:[%s0 + $0x190] sm:$0xff]
  %v59 = vld [vmem:[%s0 + $0x198] sm:$0xff]
  %v60 = vld [vmem:[%s0 + $0x1a0] sm:$0xff]
  %v61 = vld [vmem:[%s0 + $0x1a8] sm:$0xff]
  %v62 = vld [vmem:[%s0 + $0x1b0] sm:$0xff]
  %v63 = vld [vmem:[%s0 + $0x1b8] sm:$0xff]
  %v64 = vld [vmem:[%s0 + $0x1c0] sm:$0xff]
  %v65 = vld [vmem:[%s0 + $0x1c8] sm:$0xff]
  %v66 = vld [vmem:[%s0 + $0x1d0] sm:$0xff]
  %v67 = vld [vmem:[%s0 + $0x1d8] sm:$0xff]
  %v68 = vld [vmem:[%s0 + $0x1e0] sm:$0xff]
  %v69 = vld [vmem:[%s0 + $0x1e8] sm:$0xff]
  %v70 = vld [vmem:[%s0 + $0x1f0] sm:$0xff]
  %v71 = vld [vmem:[%s0 + $0x1f8] sm:$0xff]
  %136 = vrot.lane.b32.xlu0 %v8, 125
  %v137 = vpop.permute.xlu0 %136
  %138 = vrot.lane.b32.xlu0 %v9, 125
  %v139 = vpop.permute.xlu0 %138
  %140 = vrot.lane.b32.xlu0 %v10, 125
  %v141 = vpop.permute.xlu0 %140
  %142 = vrot.lane.b32.xlu0 %v11, 125
  %v143 = vpop.permute.xlu0 %142
  %144 = vrot.lane.b32.xlu0 %v12, 125
  %v145 = vpop.permute.xlu0 %144
  %146 = vrot.lane.b32.xlu0 %v13, 125
  %v147 = vpop.permute.xlu0 %146
  %148 = vrot.lane.b32.xlu0 %v14, 125
  %v149 = vpop.permute.xlu0 %148
  %150 = vrot.lane.b32.xlu0 %v15, 125
  %v151 = vpop.permute.xlu0 %150
  %152 = vrot.lane.b32.xlu0 %v16, 125
  %v153 = vpop.permute.xlu0 %152
  %154 = vrot.lane.b32.xlu0 %v17, 125
  %v155 = vpop.permute.xlu0 %154
  %156 = vrot.lane.b32.xlu0 %v18, 125
  %v157 = vpop.permute.xlu0 %156
  %158 = vrot.lane.b32.xlu0 %v19, 125
  %v159 = vpop.permute.xlu0 %158
  %160 = vrot.lane.b32.xlu0 %v20, 125
  %v161 = vpop.permute.xlu0 %160
  %162 = vrot.lane.b32.xlu0 %v21, 125
  %v163 = vpop.permute.xlu0 %162
  %164 = vrot.lane.b32.xlu0 %v22, 125
  %v165 = vpop.permute.xlu0 %164
  %166 = vrot.lane.b32.xlu0 %v23, 125
  %v167 = vpop.permute.xlu0 %166
  %168 = vrot.lane.b32.xlu0 %v24, 125
  %v169 = vpop.permute.xlu0 %168
  %170 = vrot.lane.b32.xlu0 %v25, 125
  %v171 = vpop.permute.xlu0 %170
  %172 = vrot.lane.b32.xlu0 %v26, 125
  %v173 = vpop.permute.xlu0 %172
  %174 = vrot.lane.b32.xlu0 %v27, 125
  %v175 = vpop.permute.xlu0 %174
  %176 = vrot.lane.b32.xlu0 %v28, 125
  %v177 = vpop.permute.xlu0 %176
  %178 = vrot.lane.b32.xlu0 %v29, 125
  %v179 = vpop.permute.xlu0 %178
  %180 = vrot.lane.b32.xlu0 %v30, 125
  %v181 = vpop.permute.xlu0 %180
  %182 = vrot.lane.b32.xlu0 %v31, 125
  %v183 = vpop.permute.xlu0 %182
  %184 = vrot.lane.b32.xlu0 %v32, 125
  %v185 = vpop.permute.xlu0 %184
  %186 = vrot.lane.b32.xlu0 %v33, 125
  %v187 = vpop.permute.xlu0 %186
  %188 = vrot.lane.b32.xlu0 %v34, 125
  %v189 = vpop.permute.xlu0 %188
  %190 = vrot.lane.b32.xlu0 %v35, 125
  %v191 = vpop.permute.xlu0 %190
  %192 = vrot.lane.b32.xlu0 %v36, 125
  %v193 = vpop.permute.xlu0 %192
  %194 = vrot.lane.b32.xlu0 %v37, 125
  %v195 = vpop.permute.xlu0 %194
  %196 = vrot.lane.b32.xlu0 %v38, 125
  %v197 = vpop.permute.xlu0 %196
  %198 = vrot.lane.b32.xlu0 %v39, 125
  %v199 = vpop.permute.xlu0 %198
  %200 = vrot.lane.b32.xlu0 %v40, 125
  %v201 = vpop.permute.xlu0 %200
  %202 = vrot.lane.b32.xlu0 %v41, 125
  %v203 = vpop.permute.xlu0 %202
  %204 = vrot.lane.b32.xlu0 %v42, 125
  %v205 = vpop.permute.xlu0 %204
  %206 = vrot.lane.b32.xlu0 %v43, 125
  %v207 = vpop.permute.xlu0 %206
  %208 = vrot.lane.b32.xlu0 %v44, 125
  %v209 = vpop.permute.xlu0 %208
  %210 = vrot.lane.b32.xlu0 %v45, 125
  %v211 = vpop.permute.xlu0 %210
  %212 = vrot.lane.b32.xlu0 %v46, 125
  %v213 = vpop.permute.xlu0 %212
  %214 = vrot.lane.b32.xlu0 %v47, 125
  %v215 = vpop.permute.xlu0 %214
  %216 = vrot.lane.b32.xlu0 %v48, 125
  %v217 = vpop.permute.xlu0 %216
  %218 = vrot.lane.b32.xlu0 %v49, 125
  %v219 = vpop.permute.xlu0 %218
  %220 = vrot.lane.b32.xlu0 %v50, 125
  %v221 = vpop.permute.xlu0 %220
  %222 = vrot.lane.b32.xlu0 %v51, 125
  %v223 = vpop.permute.xlu0 %222
  %224 = vrot.lane.b32.xlu0 %v52, 125
  %v225 = vpop.permute.xlu0 %224
  %226 = vrot.lane.b32.xlu0 %v53, 125
  %v227 = vpop.permute.xlu0 %226
  %228 = vrot.lane.b32.xlu0 %v54, 125
  %v229 = vpop.permute.xlu0 %228
  %230 = vrot.lane.b32.xlu0 %v55, 125
  %v231 = vpop.permute.xlu0 %230
  %232 = vrot.lane.b32.xlu0 %v56, 125
  %v233 = vpop.permute.xlu0 %232
  %234 = vrot.lane.b32.xlu0 %v57, 125
  %v235 = vpop.permute.xlu0 %234
  %236 = vrot.lane.b32.xlu0 %v58, 125
  %v237 = vpop.permute.xlu0 %236
  %238 = vrot.lane.b32.xlu0 %v59, 125
  %v239 = vpop.permute.xlu0 %238
  %240 = vrot.lane.b32.xlu0 %v60, 125
  %v241 = vpop.permute.xlu0 %240
  %242 = vrot.lane.b32.xlu0 %v61, 125
  %v243 = vpop.permute.xlu0 %242
  %244 = vrot.lane.b32.xlu0 %v62, 125
  %v245 = vpop.permute.xlu0 %244
  %246 = vrot.lane.b32.xlu0 %v63, 125
  %v247 = vpop.permute.xlu0 %246
  %248 = vrot.lane.b32.xlu0 %v64, 125
  %v249 = vpop.permute.xlu0 %248
  %250 = vrot.lane.b32.xlu0 %v65, 125
  %v251 = vpop.permute.xlu0 %250
  %252 = vrot.lane.b32.xlu0 %v66, 125
  %v253 = vpop.permute.xlu0 %252
  %254 = vrot.lane.b32.xlu0 %v67, 125
  %v255 = vpop.permute.xlu0 %254
  %256 = vrot.lane.b32.xlu0 %v68, 125
  %v257 = vpop.permute.xlu0 %256
  %258 = vrot.lane.b32.xlu0 %v69, 125
  %v259 = vpop.permute.xlu0 %258
  %260 = vrot.lane.b32.xlu0 %v70, 125
  %v261 = vpop.permute.xlu0 %260
  %262 = vrot.lane.b32.xlu0 %v71, 125
  %v263 = vpop.permute.xlu0 %262
  %vm328 = vcmask 261120
  %329 = vst.msk [vmem:[%s1] sm:$0xff] %vm328, %v137
  %330 = vst.msk [vmem:[%s1 + $0x8] sm:$0xff] %vm328, %v139
  %331 = vst.msk [vmem:[%s1 + $0x10] sm:$0xff] %vm328, %v141
  %332 = vst.msk [vmem:[%s1 + $0x18] sm:$0xff] %vm328, %v143
  %333 = vst.msk [vmem:[%s1 + $0x20] sm:$0xff] %vm328, %v145
  %334 = vst.msk [vmem:[%s1 + $0x28] sm:$0xff] %vm328, %v147
  %335 = vst.msk [vmem:[%s1 + $0x30] sm:$0xff] %vm328, %v149
  %336 = vst.msk [vmem:[%s1 + $0x38] sm:$0xff] %vm328, %v151
  %337 = vst.msk [vmem:[%s1 + $0x40] sm:$0xff] %vm328, %v153
  %338 = vst.msk [vmem:[%s1 + $0x48] sm:$0xff] %vm328, %v155
  %339 = vst.msk [vmem:[%s1 + $0x50] sm:$0xff] %vm328, %v157
  %340 = vst.msk [vmem:[%s1 + $0x58] sm:$0xff] %vm328, %v159
  %341 = vst.msk [vmem:[%s1 + $0x60] sm:$0xff] %vm328, %v161
  %342 = vst.msk [vmem:[%s1 + $0x68] sm:$0xff] %vm328, %v163
  %343 = vst.msk [vmem:[%s1 + $0x70] sm:$0xff] %vm328, %v165
  %344 = vst.msk [vmem:[%s1 + $0x78] sm:$0xff] %vm328, %v167
  %345 = vst.msk [vmem:[%s1 + $0x80] sm:$0xff] %vm328, %v169
  %346 = vst.msk [vmem:[%s1 + $0x88] sm:$0xff] %vm328, %v171
  %347 = vst.msk [vmem:[%s1 + $0x90] sm:$0xff] %vm328, %v173
  %348 = vst.msk [vmem:[%s1 + $0x98] sm:$0xff] %vm328, %v175
  %349 = vst.msk [vmem:[%s1 + $0xa0] sm:$0xff] %vm328, %v177
  %350 = vst.msk [vmem:[%s1 + $0xa8] sm:$0xff] %vm328, %v179
  %351 = vst.msk [vmem:[%s1 + $0xb0] sm:$0xff] %vm328, %v181
  %352 = vst.msk [vmem:[%s1 + $0xb8] sm:$0xff] %vm328, %v183
  %353 = vst.msk [vmem:[%s1 + $0xc0] sm:$0xff] %vm328, %v185
  %354 = vst.msk [vmem:[%s1 + $0xc8] sm:$0xff] %vm328, %v187
  %355 = vst.msk [vmem:[%s1 + $0xd0] sm:$0xff] %vm328, %v189
  %356 = vst.msk [vmem:[%s1 + $0xd8] sm:$0xff] %vm328, %v191
  %357 = vst.msk [vmem:[%s1 + $0xe0] sm:$0xff] %vm328, %v193
  %358 = vst.msk [vmem:[%s1 + $0xe8] sm:$0xff] %vm328, %v195
  %359 = vst.msk [vmem:[%s1 + $0xf0] sm:$0xff] %vm328, %v197
  %360 = vst.msk [vmem:[%s1 + $0xf8] sm:$0xff] %vm328, %v199
  %361 = vst.msk [vmem:[%s1 + $0x100] sm:$0xff] %vm328, %v201
  %362 = vst.msk [vmem:[%s1 + $0x108] sm:$0xff] %vm328, %v203
  %363 = vst.msk [vmem:[%s1 + $0x110] sm:$0xff] %vm328, %v205
  %364 = vst.msk [vmem:[%s1 + $0x118] sm:$0xff] %vm328, %v207
  %365 = vst.msk [vmem:[%s1 + $0x120] sm:$0xff] %vm328, %v209
  %366 = vst.msk [vmem:[%s1 + $0x128] sm:$0xff] %vm328, %v211
  %367 = vst.msk [vmem:[%s1 + $0x130] sm:$0xff] %vm328, %v213
  %368 = vst.msk [vmem:[%s1 + $0x138] sm:$0xff] %vm328, %v215
  %369 = vst.msk [vmem:[%s1 + $0x140] sm:$0xff] %vm328, %v217
  %370 = vst.msk [vmem:[%s1 + $0x148] sm:$0xff] %vm328, %v219
  %371 = vst.msk [vmem:[%s1 + $0x150] sm:$0xff] %vm328, %v221
  %372 = vst.msk [vmem:[%s1 + $0x158] sm:$0xff] %vm328, %v223
  %373 = vst.msk [vmem:[%s1 + $0x160] sm:$0xff] %vm328, %v225
  %374 = vst.msk [vmem:[%s1 + $0x168] sm:$0xff] %vm328, %v227
  %375 = vst.msk [vmem:[%s1 + $0x170] sm:$0xff] %vm328, %v229
  %376 = vst.msk [vmem:[%s1 + $0x178] sm:$0xff] %vm328, %v231
  %377 = vst.msk [vmem:[%s1 + $0x180] sm:$0xff] %vm328, %v233
  %378 = vst.msk [vmem:[%s1 + $0x188] sm:$0xff] %vm328, %v235
  %379 = vst.msk [vmem:[%s1 + $0x190] sm:$0xff] %vm328, %v237
  %380 = vst.msk [vmem:[%s1 + $0x198] sm:$0xff] %vm328, %v239
  %381 = vst.msk [vmem:[%s1 + $0x1a0] sm:$0xff] %vm328, %v241
  %382 = vst.msk [vmem:[%s1 + $0x1a8] sm:$0xff] %vm328, %v243
  %383 = vst.msk [vmem:[%s1 + $0x1b0] sm:$0xff] %vm328, %v245
  %384 = vst.msk [vmem:[%s1 + $0x1b8] sm:$0xff] %vm328, %v247
  %385 = vst.msk [vmem:[%s1 + $0x1c0] sm:$0xff] %vm328, %v249
  %386 = vst.msk [vmem:[%s1 + $0x1c8] sm:$0xff] %vm328, %v251
  %387 = vst.msk [vmem:[%s1 + $0x1d0] sm:$0xff] %vm328, %v253
  %388 = vst.msk [vmem:[%s1 + $0x1d8] sm:$0xff] %vm328, %v255
  %389 = vst.msk [vmem:[%s1 + $0x1e0] sm:$0xff] %vm328, %v257
  %390 = vst.msk [vmem:[%s1 + $0x1e8] sm:$0xff] %vm328, %v259
  %391 = vst.msk [vmem:[%s1 + $0x1f0] sm:$0xff] %vm328, %v261
  %392 = vst.msk [vmem:[%s1 + $0x1f8] sm:$0xff] %vm328, %v263
  // Predicated region
  $region6: #{tpu_custom_call.1} parent=0 // pred_check
    _
  $region7: #{tpu_custom_call.1} parent=0 // pred_check_branch
    %394 = sbr.rel (0) target = $region9
  $region8: #{tpu_custom_call.1} parent=0 // pred_region
    _
  $region9: #{tpu_custom_call.1} parent=0 // pred_fallthru
    _
  // Predicated region
  $region10: #{tpu_custom_call.1} parent=0 // pred_check
    _
  $region11: #{tpu_custom_call.1} parent=0 // pred_check_branch
    %396 = sbr.rel (0) target = $region13
  $region12: #{tpu_custom_call.1} parent=0 // pred_region
    _
  $region13: #{tpu_custom_call.1} parent=0 // pred_fallthru
    _

</llo_original>
